<compile_context>
chip_gen: v6e
topology: v6e:2x2x1
jax: 0.10.0
libtpu: 0.0.40
codegen_flags: <defaults>
</compile_context>

<pallas_src>
import functools

import numpy as np
import jax
import jax.numpy as jnp
from jax.experimental import pallas as pl
from jax.experimental.pallas import tpu as pltpu


# ----------------------------------------------------------------------------
# Generation-aware tiling defaults
# ----------------------------------------------------------------------------
@functools.lru_cache(maxsize=1)
def _tpu_defaults():
    kind = ""
    try:
        kind = (getattr(jax.devices()[0], "device_kind", "") or "").lower()
    except Exception:
        kind = ""
    if "v7" in kind:
        # 2 TensorCores/chip, 64 MiB VMEM per core (32 MiB scoped default).
        return {"row_target": 768, "vmem_limit": 48 << 20, "multi_tc": True}
    if "v6" in kind or "v5" in kind:
        # single TensorCore, 128 MiB physical VMEM (16/32 MiB scoped default).
        return {"row_target": 1536, "vmem_limit": 96 << 20, "multi_tc": False}
    return {"row_target": 1024, "vmem_limit": 64 << 20, "multi_tc": False}


def _row_tile(M, target, multi_tc):
    """Largest divisor of M that is a multiple of 16 and <= target.

    Single-TC chips: no forced split when M fits (the grid is a serial loop).
    Multi-TC chips: aim for >= 4 grid steps (>= 2 per core) so each core keeps
    double-buffered DMA/compute overlap, as long as the tile stays >= 64 rows.
    """
    def best_divisor(limit, step):
        tm = min(limit, M)
        tm -= tm % step
        while tm >= step:
            if M % tm == 0:
                return tm
            tm -= step
        return None

    if M <= target:
        tm = M
    else:
        tm = best_divisor(target, 16) or best_divisor(target, 8) or M
    if multi_tc:
        while M // tm < 4 and tm % 2 == 0 and tm >= 128:
            tm //= 2
    return tm


def _pick_window_batch(Bw, nW, N, multi_tc, row_target):
    """Windows per attention grid step; must divide Bw and align with the nW
    shift-mask period.  Single-TC chips may take all windows in one step."""
    cap = max(1, (2 * row_target) // max(N, 1))
    cap = min(cap, Bw)
    if multi_tc and Bw >= 4:
        cap = min(cap, Bw // 4)            # >= 4 grid steps (>= 2 per core)
    wb, c = 1, 1
    while c <= cap:
        if Bw % c == 0 and (c % nW == 0 or nW % c == 0):
            wb = c
        c *= 2
    return wb


# ----------------------------------------------------------------------------
# Fused (LayerNorm +) Linear (+ activation) (+ residual) kernel, row-tiled
# ----------------------------------------------------------------------------
_SQRT_2_OVER_PI = 0.7978845608028654


def _make_linear_kernel(has_ln, has_bias, has_res, act, eps=1e-5):
    def kernel(*refs):
        it = iter(refs)
        x_ref = next(it)
        g_ref = next(it) if has_ln else None
        be_ref = next(it) if has_ln else None
        w_ref = next(it)
        b_ref = next(it) if has_bias else None
        r_ref = next(it) if has_res else None
        o_ref = next(it)

        x = x_ref[...]                               # bf16
        if has_ln:                                   # fused LayerNorm prologue
            xf = x.astype(jnp.float32)
            mu = jnp.mean(xf, axis=-1, keepdims=True)
            xc = xf - mu
            var = jnp.mean(xc * xc, axis=-1, keepdims=True)
            xf = xc * jax.lax.rsqrt(var + eps) * g_ref[...] + be_ref[...]
            x = xf.astype(jnp.bfloat16)

        y = jnp.dot(x, w_ref[...], preferred_element_type=jnp.float32)
        if has_bias:
            y = y + b_ref[...]

        if act == "relu":
            y = jnp.maximum(y, 0.0)
        elif act == "sigmoid":                       # stable, exact reciprocal
            z = jnp.exp(-jnp.abs(y))
            r = 1.0 / (1.0 + z)
            y = jnp.where(y >= 0, r, z * r)
        elif act == "gelu":
            # TODO(synk): tanh-approx GELU (guaranteed Mosaic lowering);
            # torch.nn.GELU default is the exact-erf form (max |err| ~3e-3).
            y = 0.5 * y * (1.0 + jnp.tanh(_SQRT_2_OVER_PI *
                                          (y + 0.044715 * y * y * y)))
        if has_res:                                  # fused residual epilogue
            y = y + r_ref[...].astype(jnp.float32)
        o_ref[...] = y.astype(o_ref.dtype)
    return kernel


def fused_linear(x, w, b=None, *, ln=None, act="none", residual=None,
                 out_dtype=jnp.bfloat16):
    """y = act(LayerNorm?(x) @ w (+ b)) (+ residual), row-tiled.

    x: (M, K); w: (K, N); b: (N,) | None; ln: (gamma, beta) each (K,) | None;
    residual: (M, N) | None.  MXU operands bf16, accumulation/epilogue f32.
    Narrow (<128) output dims are padded to a full 128-lane vreg in-kernel
    (lane-dense stores) and sliced back in XLA.
    """
    M, K = x.shape
    N = w.shape[1]
    cfg = _tpu_defaults()
    TM = _row_tile(M, cfg["row_target"], cfg["multi_tc"])
    grid = (M // TM,)

    Np = N if N >= 128 else 128
    w_p = w.astype(jnp.bfloat16)
    b_p = None if b is None else b.astype(jnp.float32)
    r_p = None if residual is None else residual.astype(jnp.bfloat16)
    if Np != N:
        w_p = jnp.pad(w_p, ((0, 0), (0, Np - N)))
        if b_p is not None:
            b_p = jnp.pad(b_p, ((0, Np - N),))
        if r_p is not None:
            r_p = jnp.pad(r_p, ((0, 0), (0, Np - N)))

    inputs = [x.astype(jnp.bfloat16)]
    in_specs = [pl.BlockSpec((TM, K), lambda i: (i, 0))]
    if ln is not None:
        g, be = ln
        inputs += [g.reshape(1, K).astype(jnp.float32),
                   be.reshape(1, K).astype(jnp.float32)]
        in_specs += [pl.BlockSpec((1, K), lambda i: (0, 0))] * 2
    inputs.append(w_p)
    in_specs.append(pl.BlockSpec((K, Np), lambda i: (0, 0)))
    if b_p is not None:
        inputs.append(b_p.reshape(1, Np))
        in_specs.append(pl.BlockSpec((1, Np), lambda i: (0, 0)))
    if r_p is not None:
        inputs.append(r_p)
        in_specs.append(pl.BlockSpec((TM, Np), lambda i: (i, 0)))

    kernel = _make_linear_kernel(ln is not None, b is not None,
                                 residual is not None, act)
    out_bytes = jnp.dtype(out_dtype).itemsize
    cost = pl.CostEstimate(
        flops=2 * M * K * Np,
        transcendentals=(M * Np) if act in ("gelu", "sigmoid") else 0,
        bytes_accessed=(M * K * 2 + K * Np * 2 + M * Np * out_bytes
                        + (M * Np * 2 if residual is not None else 0)))

    y = pl.pallas_call(
        kernel,
        out_shape=jax.ShapeDtypeStruct((M, Np), out_dtype),
        grid=grid,
        in_specs=in_specs,
        out_specs=pl.BlockSpec((TM, Np), lambda i: (i, 0)),
        compiler_params=pltpu.CompilerParams(
            dimension_semantics=("parallel",),
            vmem_limit_bytes=cfg["vmem_limit"]),
        cost_estimate=cost,
    )(*inputs)
    if Np != N:
        y = y[:, :N]
    return y


# ----------------------------------------------------------------------------
# Fused windowed multi-head attention kernel (WB windows per grid step)
# ----------------------------------------------------------------------------
def _window_attn_kernel(qkv_ref, rel_ref, mask_ref, o_ref, *, nh, C):
    qkv = qkv_ref[...]                     # (WB, N, 3C)  bf16, q pre-scaled
    rel = rel_ref[...]                     # (nh, N, N)   f32
    mask = mask_ref[...]                   # (1|WB, N, N) f32
    d = C // nh
    outs = []
    # TODO(synk): per-head lane slices (d < 128) still cost in-VMEM lane
    # shuffles; a head-major qkv layout would require an extra HBM permute
    # pass, so we keep the packed layout and pay the cheap in-VMEM slice.
    for h in range(nh):                    # nh is small; statically unrolled
        q = qkv[:, :, h * d:(h + 1) * d]
        k = qkv[:, :, C + h * d:C + (h + 1) * d]
        v = qkv[:, :, 2 * C + h * d:2 * C + (h + 1) * d]
        s = jnp.einsum("wqd,wkd->wqk", q, k,
                       preferred_element_type=jnp.float32)
        s = s + (rel[h][None, :, :] + mask)
        m = jnp.max(s, axis=-1, keepdims=True)
        p = jnp.exp(s - m)
        l = jnp.sum(p, axis=-1, keepdims=True)
        o = jnp.einsum("wqk,wkd->wqd", p.astype(jnp.bfloat16), v,
                       preferred_element_type=jnp.float32)
        outs.append((o * pl.reciprocal(l, approx=True)).astype(o_ref.dtype))
    # single lane-dense store instead of nh masked sub-lane stores
    o_ref[...] = jnp.concatenate(outs, axis=-1)


def window_attention(qkv, rel, mask, nW, nh, out_dtype=jnp.bfloat16):
    """qkv: (Bw, N, 3C) bf16 (q pre-scaled); rel: (nh, N, N) f32;
    mask: None | (nW, N, N) f32."""
    Bw, N, threeC = qkv.shape
    C = threeC // 3
    cfg = _tpu_defaults()
    WB = _pick_window_batch(Bw, nW if mask is not None else 1, N,
                            cfg["multi_tc"], cfg["row_target"])
    grid_steps = Bw // WB

    in_specs = [pl.BlockSpec((WB, N, threeC), lambda i: (i, 0, 0)),
                pl.BlockSpec((nh, N, N), lambda i: (0, 0, 0))]
    if mask is None:
        mask_arr = jnp.zeros((1, N, N), jnp.float32)
        in_specs.append(pl.BlockSpec((1, N, N), lambda i: (0, 0, 0)))
    elif WB % nW == 0:
        mask_arr = jnp.tile(mask, (WB // nW, 1, 1))        # (WB, N, N), tiny
        in_specs.append(pl.BlockSpec((WB, N, N), lambda i: (0, 0, 0)))
    else:                                                  # nW % WB == 0
        mask_arr = mask
        nblk = nW // WB
        in_specs.append(pl.BlockSpec((WB, N, N), lambda i: (i % nblk, 0, 0)))

    kernel = functools.partial(_window_attn_kernel, nh=nh, C=C)
    cost = pl.CostEstimate(
        flops=4 * Bw * N * N * C,
        transcendentals=Bw * nh * N * N,
        bytes_accessed=(Bw * N * threeC * 2 + Bw * N * C * 2
                        + nh * N * N * 4 * grid_steps
                        + int(mask_arr.size) * 4 * grid_steps))
    return pl.pallas_call(
        kernel,
        out_shape=jax.ShapeDtypeStruct((Bw, N, C), out_dtype),
        grid=(grid_steps,),
        in_specs=in_specs,
        out_specs=pl.BlockSpec((WB, N, C), lambda i: (i, 0, 0)),
        compiler_params=pltpu.CompilerParams(
            dimension_semantics=("parallel",),
            vmem_limit_bytes=cfg["vmem_limit"]),
        cost_estimate=cost,
    )(qkv, rel, mask_arr)


# ----------------------------------------------------------------------------
# Layout glue (pure permutations / precompute; no compute)
# ----------------------------------------------------------------------------
def window_partition(x, ws):
    B, H, W, C = x.shape
    x = x.reshape(B, H // ws, ws, W // ws, ws, C)
    x = x.transpose(0, 1, 3, 2, 4, 5)
    return x.reshape(-1, ws * ws, C)


def window_reverse(w, ws, H, W, B):
    x = w.reshape(B, H // ws, W // ws, ws, ws, -1)
    x = x.transpose(0, 1, 3, 2, 4, 5)
    return x.reshape(B, H, W, -1)


def relative_position_index(ws):
    coords = np.stack(np.meshgrid(np.arange(ws), np.arange(ws), indexing="ij"))
    cf = coords.reshape(2, -1)
    rel = (cf[:, :, None] - cf[:, None, :]).transpose(1, 2, 0).astype(np.int64)
    rel[:, :, 0] += ws - 1
    rel[:, :, 1] += ws - 1
    rel[:, :, 0] *= 2 * ws - 1
    return rel.sum(-1)  # (ws*ws, ws*ws)


def compute_attn_mask(H, W, ws, shift):
    img = np.zeros((H, W))
    slices = (slice(0, -ws), slice(-ws, -shift), slice(-shift, None))
    cnt = 0
    for hs in slices:
        for wsl in slices:
            img[hs, wsl] = cnt
            cnt += 1
    mw = img.reshape(H // ws, ws, W // ws, ws).transpose(0, 2, 1, 3).reshape(-1, ws * ws)
    am = mw[:, None, :] - mw[:, :, None]
    return np.where(am != 0, -100.0, 0.0).astype(np.float32)  # (nW, N, N)


# ----------------------------------------------------------------------------
# Parameter construction (deterministic, synthetic)
# ----------------------------------------------------------------------------
class KeyGen:
    def __init__(self, key):
        self.key = key
        self.i = 0

    def __call__(self):
        self.i += 1
        return jax.random.fold_in(self.key, self.i)


def trunc_normal(key, shape, std=0.02):
    return (std * jax.random.truncated_normal(key, -2.0, 2.0, shape)).astype(jnp.float32)


def mm_weight(key, shape, std=0.02):
    # matmul weights stored in bf16: halves HBM/VMEM traffic, unlocks MXU bf16 peak
    return trunc_normal(key, shape, std).astype(jnp.bfloat16)


def make_decoder_params(key, img_size, embed_dims, depths, num_heads, C,
                        window_size=4, mlp_ratio=4.0):
    kg = KeyGen(key)
    num_layers = len(depths)
    pr = (img_size[0] // 2 ** num_layers, img_size[1] // 2 ** num_layers)
    emb0 = int(embed_dims[0])
    hidden = int(emb0 * 1.5)

    params = {
        "head_w": mm_weight(kg(), (C, emb0)),
        "head_b": jnp.zeros((emb0,), jnp.float32),
    }

    # sm_list (8 linears, Pallas) and bm_list (7 AdaptiveModulators, plain XLA)
    sm = [{"w": mm_weight(kg(), (emb0, hidden)), "b": jnp.zeros((hidden,), jnp.float32)}]
    for i in range(7):
        outdim = emb0 if i == 6 else hidden
        sm.append({"w": mm_weight(kg(), (hidden, outdim)),
                   "b": jnp.zeros((outdim,), jnp.float32)})
    params["sm"] = sm

    bm = []
    for _ in range(7):
        bm.append({
            "w0": trunc_normal(kg(), (1, hidden)), "b0": jnp.zeros((hidden,), jnp.float32),
            "w1": trunc_normal(kg(), (hidden, hidden)), "b1": jnp.zeros((hidden,), jnp.float32),
            "w2": trunc_normal(kg(), (hidden, hidden)), "b2": jnp.zeros((hidden,), jnp.float32),
        })
    params["bm"] = bm

    layers = []
    for il in range(num_layers):
        dim = int(embed_dims[il])
        out_dim = int(embed_dims[il + 1]) if il < num_layers - 1 else 3
        res = (pr[0] * 2 ** il, pr[1] * 2 ** il)
        nh = num_heads[il]
        mlp_hidden = int(dim * mlp_ratio)
        blocks = []
        for d in range(depths[il]):
            if min(res) <= window_size:
                ws, shift = min(res), 0
            else:
                ws, shift = window_size, (0 if d % 2 == 0 else window_size // 2)
            N = ws * ws
            # precompute relative-position bias gather once (forward-time win)
            rpb = trunc_normal(kg(), ((2 * ws - 1) * (2 * ws - 1), nh))
            rpi = jnp.asarray(relative_position_index(ws).reshape(-1))
            rel = rpb[rpi].reshape(N, N, nh).transpose(2, 0, 1)   # (nh, N, N) f32

            # Fold the attention scale into the q projection (columns [:dim]):
            # scale is linear and pre-softmax, so the math is identical and the
            # kernel never rescales q.
            scale = float(dim // nh) ** -0.5
            qkv_w = trunc_normal(kg(), (dim, 3 * dim))
            qkv_b = jnp.zeros((3 * dim,), jnp.float32)
            qkv_w = qkv_w.at[:, :dim].multiply(scale)
            qkv_b = qkv_b.at[:dim].multiply(scale)

            blk = {
                "ws": ws, "shift": shift, "nh": nh,
                "nW": (res[0] // ws) * (res[1] // ws),
                "norm1_g": jnp.ones((dim,), jnp.float32), "norm1_b": jnp.zeros((dim,), jnp.float32),
                "qkv_w": qkv_w.astype(jnp.bfloat16), "qkv_b": qkv_b,
                "proj_w": mm_weight(kg(), (dim, dim)), "proj_b": jnp.zeros((dim,), jnp.float32),
                "rel": rel,
                "norm2_g": jnp.ones((dim,), jnp.float32), "norm2_b": jnp.zeros((dim,), jnp.float32),
                "fc1_w": mm_weight(kg(), (dim, mlp_hidden)), "fc1_b": jnp.zeros((mlp_hidden,), jnp.float32),
                "fc2_w": mm_weight(kg(), (mlp_hidden, dim)), "fc2_b": jnp.zeros((dim,), jnp.float32),
                "attn_mask": (jnp.asarray(compute_attn_mask(res[0], res[1], ws, shift))
                              if shift > 0 else None),
            }
            blocks.append(blk)
        up = {
            "norm_g": jnp.ones((dim,), jnp.float32), "norm_b": jnp.zeros((dim,), jnp.float32),
            "inc_w": mm_weight(kg(), (dim, out_dim * 4)),   # bias=False
        }
        layers.append({"dim": dim, "out_dim": out_dim, "res": res,
                       "blocks": blocks, "up": up})
    params["layers"] = layers
    params["config"] = {"H": img_size[0], "W": img_size[1],
                        "emb0": emb0, "hidden": hidden, "layer_num": 7}
    return params


# ----------------------------------------------------------------------------
# Forward pass
# ----------------------------------------------------------------------------
def swin_block_forward(x, blk, H, W):
    """x: (B, L, C) — one SwinTransformerBlock (drop / drop_path = 0)."""
    B, L, C = x.shape
    ws, shift, nh = blk["ws"], blk["shift"], blk["nh"]
    N = ws * ws
    shortcut = x.reshape(B * L, C)

    # LayerNorm is per-token, so it commutes with the roll / window-partition
    # permutation: partition the raw tokens, then fuse norm1 into the qkv kernel.
    # TODO(synk): the roll / partition / reverse permutes are still full-array
    # XLA HBM passes; folding the window gather into the qkv kernel's index_map
    # (scalar-prefetch row offsets) would remove ~4 passes per block.
    xs = x.reshape(B, H, W, C)
    if shift > 0:
        xs = jnp.roll(xs, shift=(-shift, -shift), axis=(1, 2))
    xw = window_partition(xs, ws)                            # (Bw, N, C)
    Bw = xw.shape[0]

    qkv = fused_linear(xw.reshape(Bw * N, C), blk["qkv_w"], blk["qkv_b"],
                       ln=(blk["norm1_g"], blk["norm1_b"]))
    qkv = qkv.reshape(Bw, N, 3 * C)

    attn = window_attention(qkv, blk["rel"], blk["attn_mask"], blk["nW"],
                            nh)                              # (Bw, N, C)

    # proj is a per-token linear → commutes with window_reverse / roll-back;
    # applying it after the un-permute lets us fuse the residual add.
    xr = window_reverse(attn, ws, H, W, B)
    if shift > 0:
        xr = jnp.roll(xr, shift=(shift, shift), axis=(1, 2))
    x = fused_linear(xr.reshape(B * L, C), blk["proj_w"], blk["proj_b"],
                     residual=shortcut)                      # (B*L, C)

    # MLP: fused norm2 + fc1 + GELU, then fc2 + residual.
    # TODO(synk): residual stream is carried in bf16 (small drift vs f32 torch).
    h = fused_linear(x, blk["fc1_w"], blk["fc1_b"],
                     ln=(blk["norm2_g"], blk["norm2_b"]), act="gelu")
    x = fused_linear(h, blk["fc2_w"], blk["fc2_b"], residual=x)
    return x.reshape(B, L, C)


def patch_reverse_merging(x, up, H, W, out_dim, final=False):
    """norm -> Linear(dim, 4*out_dim, bias=False) -> 2x pixel-shuffle upsample.

    fused_linear pads the narrow (4*out_dim) output to 128 lanes in-kernel
    (lane-dense stores) and slices back here before the pixel shuffle."""
    B, L, C = x.shape
    y = fused_linear(x.reshape(B * L, C), up["inc_w"], None,
                     ln=(up["norm_g"], up["norm_b"]),
                     out_dtype=jnp.float32 if final else jnp.bfloat16)
    y = y.reshape(B, H, W, 2, 2, out_dim)
    y = y.transpose(0, 1, 3, 2, 4, 5).reshape(B, H * 2, W * 2, out_dim)
    return y.reshape(B, H * 2 * W * 2, out_dim)


def decoder_forward(params, x, snr, model):
    cfg = params["config"]

    def run_layers(x):
        n_layers = len(params["layers"])
        for li, layer in enumerate(params["layers"]):
            H, W = layer["res"]
            for blk in layer["blocks"]:
                x = swin_block_forward(x, blk, H, W)
            x = patch_reverse_merging(x, layer["up"], H, W, layer["out_dim"],
                                      final=(li == n_layers - 1))
        return x

    def head(x):
        B, L, Cin = x.shape
        y = fused_linear(x.reshape(B * L, Cin), params["head_w"], params["head_b"])
        return y.reshape(B, L, -1)

    def sa_modulation(x):
        B, L, emb0 = x.shape
        hidden = cfg["hidden"]
        snr_batch = jnp.full((B, 1), snr, jnp.float32)
        # AdaptiveModulator gates are (B,1)@(1,hidden) MLPs (K=1): the MXU does
        # nothing useful there, so compute them in plain XLA instead of ~21
        # µs-overhead pallas_call launches.
        gates = []
        for i in range(cfg["layer_num"]):
            bmp = params["bm"][i]
            h = jax.nn.relu(snr_batch @ bmp["w0"] + bmp["b0"])
            h = jax.nn.relu(h @ bmp["w1"] + bmp["b1"])
            gates.append(jax.nn.sigmoid(h @ bmp["w2"] + bmp["b2"]))   # (B, hidden)

        temp = None
        for i in range(cfg["layer_num"]):
            inp = x if i == 0 else temp
            Ci = inp.shape[-1]
            t = fused_linear(inp.reshape(B * L, Ci),
                             params["sm"][i]["w"], params["sm"][i]["b"]).reshape(B, L, -1)
            temp = t * gates[i][:, None, :]
        mod = fused_linear(temp.reshape(B * L, hidden),
                           params["sm"][-1]["w"], params["sm"][-1]["b"],
                           act="sigmoid").reshape(B, L, emb0)
        return x * mod

    if model == "SwinJSCC_w/o_SAandRA":
        x = head(x)
        x = run_layers(x)
    elif model == "SwinJSCC_w/_SA":
        x = head(x)
        x = sa_modulation(x)
        x = run_layers(x)
    elif model == "SwinJSCC_w/_RA":
        x = run_layers(x)
    elif model == "SwinJSCC_w/_SAandRA":
        x = sa_modulation(x)
        x = run_layers(x)
    else:
        raise ValueError(model)

    B, L, N = x.shape
    H, W = cfg["H"], cfg["W"]
    # final output is NCHW (B, 3, H, W), matching PyTorch's permute(0, 3, 1, 2)
    return x.reshape(B, H, W, N).transpose(0, 3, 1, 2).astype(jnp.float32)


# ----------------------------------------------------------------------------
if __name__ == "__main__":
    img_size = (16, 16)
    embed_dims = [32, 16]
    depths = [2, 2]
    num_heads = [2, 2]
    C = 8
    window_size = 4

    key = jax.random.PRNGKey(0)
    params = make_decoder_params(jax.random.fold_in(key, 1), img_size, embed_dims,
                                 depths, num_heads, C, window_size, mlp_ratio=4.0)

    B = 2
    L = (img_size[0] // 2 ** len(depths)) * (img_size[1] // 2 ** len(depths))  # 16
    x = jax.random.normal(jax.random.fold_in(key, 2), (B, L, C), jnp.float32)
    snr = 10.0

    out = decoder_forward(params, x, snr, "SwinJSCC_w/_SA")
    out = jax.block_until_ready(out)
    assert out.shape == (B, 3, img_size[0], img_size[1]), out.shape
    assert bool(jnp.all(jnp.isfinite(out)))
    print("KERNEL_OK")
</pallas_src>

<mosaic_0001>
module attributes {stable_mosaic.version = 11 : i64} {
  func.func @kernel(%arg0: i32, %arg1: memref<32x8xbf16, #tpu.memory_space<vmem>>, %arg2: memref<8x128xbf16, #tpu.memory_space<vmem>>, %arg3: memref<1x128xf32, #tpu.memory_space<vmem>>, %arg4: memref<32x128xbf16, #tpu.memory_space<vmem>>) attributes {dimension_semantics = [#tpu.dimension_semantics<parallel>], iteration_bounds = array<i64: 1>, scalar_prefetch = 0 : i64, scratch_operands = 0 : i64, tpu.core_type = #tpu.core_type<tc>, window_params = [{transform_indices = @transform_0, window_bounds = array<i64: 32, 8>}, {pipeline_mode = #tpu.pipeline_mode<synchronous>, transform_indices = @transform_1, window_bounds = array<i64: 8, 128>}, {pipeline_mode = #tpu.pipeline_mode<synchronous>, transform_indices = @transform_2, window_bounds = array<i64: 1, 128>}, {transform_indices = @transform_3, window_bounds = array<i64: 32, 128>}]} {
    %c0 = arith.constant 0 : index
    %c0_0 = arith.constant 0 : index
    %0 = vector.load %arg1[%c0, %c0_0] : memref<32x8xbf16, #tpu.memory_space<vmem>>, vector<32x8xbf16>
    %c0_1 = arith.constant 0 : index
    %c0_2 = arith.constant 0 : index
    %1 = vector.load %arg2[%c0_1, %c0_2] : memref<8x128xbf16, #tpu.memory_space<vmem>>, vector<8x128xbf16>
    %cst = arith.constant dense<0.000000e+00> : vector<32x128xf32>
    %2 = tpu.matmul %0, %1, %cst {dimension_numbers = #tpu.dot_dimension_numbers<[1], [0], [0], [1], [0, 0, 1, 1], [], []>} : vector<32x8xbf16>, vector<8x128xbf16>, vector<32x128xf32> -> vector<32x128xf32>
    %c0_3 = arith.constant 0 : index
    %c0_4 = arith.constant 0 : index
    %3 = vector.load %arg3[%c0_3, %c0_4] : memref<1x128xf32, #tpu.memory_space<vmem>>, vector<1x128xf32>
    %4 = vector.broadcast %3 : vector<1x128xf32> to vector<32x128xf32>
    %5 = arith.addf %2, %4 : vector<32x128xf32>
    %6 = arith.truncf %5 : vector<32x128xf32> to vector<32x128xbf16>
    %c0_5 = arith.constant 0 : index
    %c0_6 = arith.constant 0 : index
    %7 = vector.load %arg4[%c0_5, %c0_6] : memref<32x128xbf16, #tpu.memory_space<vmem>>, vector<32x128xbf16>
    tpu.vector_store %arg4[%c0_5, %c0_6], %6 {strides = array<i32>} : memref<32x128xbf16, #tpu.memory_space<vmem>>, vector<32x128xbf16>,
    return
  }
  func.func @transform_0(%arg0: i32) -> (i32, i32) {
    %c0_i32 = arith.constant 0 : i32
    %c0_i32_0 = arith.constant 0 : i32
    return %arg0, %c0_i32 : i32, i32
  }
  func.func @transform_1(%arg0: i32) -> (i32, i32) {
    %c0_i32 = arith.constant 0 : i32
    %c0_i32_0 = arith.constant 0 : i32
    %c0_i32_1 = arith.constant 0 : i32
    return %c0_i32, %c0_i32_0 : i32, i32
  }
  func.func @transform_2(%arg0: i32) -> (i32, i32) {
    %c0_i32 = arith.constant 0 : i32
    %c0_i32_0 = arith.constant 0 : i32
    %c0_i32_1 = arith.constant 0 : i32
    return %c0_i32, %c0_i32_0 : i32, i32
  }
  func.func @transform_3(%arg0: i32) -> (i32, i32) {
    %c0_i32 = arith.constant 0 : i32
    %c0_i32_0 = arith.constant 0 : i32
    return %arg0, %c0_i32 : i32, i32
  }
}

</mosaic_0001>

<llo_original>
// kernel: tpu_custom_call.1
$region0: #{tpu_custom_call.1}
  #allocation0 [shape = 'u32[]', space=smem, size = 0x4, offset = 0x4, fixed_abs, tag = 'smem constant byte address 0x4 - core index']
  #allocation1 [shape = 'u32[144,128]{1,0:T(1,128)}', space=vmem, size = 0x12000, scoped, tag = 'internal scratch']
  %s0 = inlined_call_operand.vmem [shape: bf16[32,8], index: 0, kind: input, shape index: {}]
  %s1 = inlined_call_operand.vmem [shape: bf16[8,128], index: 1, kind: input, shape index: {}]
  %s2 = inlined_call_operand.vmem [shape: f32[1,128], index: 2, kind: input, shape index: {}]
  %s3 = inlined_call_operand.hbm [shape: bf16[32,128], index: 3, kind: output, shape index: {}]
  %s4 = sld [smem:[#allocation0]]
  $region22: #{tpu_custom_call.1} parent=0
    _
  %s6 = ssub.s32 1, %s4
  %s7 = scalar_select 0, %s6, %s4
  $region1: #{tpu_custom_call.1} parent=0
    #allocation2 [shape = 'u8[8192]{0}', space=vmem, size = 0x2000, scoped, tag = 'output window, operand 0, single buffered']
    #allocation3 [shape = 's32[1]{0}', space=sflag, size = 0x4, scoped, tag = 'scoped memory for tpu_custom_call.1']
    %8 = vsyncpa [#allocation3], 0
    // Predicated region
    $region2: #{tpu_custom_call.1} parent=1 // pred_check
      _
    $region3: #{tpu_custom_call.1} parent=1 // pred_check_branch
      %10 = sbr.rel (0) target = $region5
    $region4: #{tpu_custom_call.1} parent=1 // pred_region
      _
    $region5: #{tpu_custom_call.1} parent=1 // pred_fallthru
      _
    // Predicated region
    $region6: #{tpu_custom_call.1} parent=1 // pred_check
      _
    $region7: #{tpu_custom_call.1} parent=1 // pred_check_branch
      %12 = sbr.rel (0) target = $region9
    $region8: #{tpu_custom_call.1} parent=1 // pred_region
      _
    $region9: #{tpu_custom_call.1} parent=1 // pred_fallthru
      _
    // Predicated region
    $region10: #{tpu_custom_call.1} parent=1 // pred_check
      _
    $region11: #{tpu_custom_call.1} parent=1 // pred_check_branch
      %14 = sbr.rel (0) target = $region13
    $region12: #{tpu_custom_call.1} parent=1 // pred_region
      _
    $region13: #{tpu_custom_call.1} parent=1 // pred_fallthru
      _
    %v16 = vld [vmem:[%s0] sm:$0xf]
    %v17 = vld [vmem:[%s0 + $0x4] sm:$0xf]
    %v18 = vld [vmem:[%s0 + $0x8] sm:$0xf]
    %v19 = vld [vmem:[%s0 + $0xc] sm:$0xf]
    %v20 = vld [vmem:[%s1] sm:$0xf]
    %v21 = vld [vmem:[%s2] sm:$0x1]
    %v23 = vlaneseq
    %v24 = vshrl.u32 %v23, 7
    %v25 = vsub.s32 0, %v24
    %v26 = vrot.slane %v21, %v25
    %v32 = vunpack.c.l.b16 %v16
    %v33 = vunpack.c.l.b16 %v17
    %v34 = vunpack.c.l.b16 %v18
    %v35 = vunpack.c.l.b16 %v19
    %v36 = vpack.c.b16 %v33, %v32
    %v37 = vpack.c.b16 %v35, %v34
    %vm38 = vcmask 64512
    %v40 = vsel %vm38, %v36, 0
    %v43 = vsel %vm38, %v37, 0
    %vm45 = vcmask 1043456
    %v47 = vsel %vm45, %v20, 0
    %49 = vmatprep.subr.bf16.mxu0 0
    %50 = vmatpush1.bf16.msra.mxu0 0
    %51 = vmatprep.subr.bf16.mxu0 0
    %52 = vmatpush1.bf16.msra.mxu0 0
    %53 = vmatprep.subr.bf16.mxu0 0
    %54 = vmatpush1.bf16.msra.mxu0 0
    %55 = vmatprep.subr.bf16.mxu0 0
    %56 = vmatpush1.bf16.msra.mxu0 0
    %57 = vmatprep.subr.bf16.mxu0 0
    %58 = vmatpush1.bf16.msra.mxu0 0
    %59 = vmatprep.subr.bf16.mxu0 0
    %60 = vmatpush1.bf16.msra.mxu0 0
    %61 = vmatprep.subr.bf16.mxu0 0
    %62 = vmatpush1.bf16.msra.mxu0 0
    %63 = vmatprep.subr.bf16.mxu0 0
    %64 = vmatpush1.bf16.msra.mxu0 %v47
    %65 = vmatprep.subr.bf16.mxu0 0
    %66 = vmatpush2.bf16.msra.mxu0 0
    %67 = vmatprep.subr.bf16.mxu0 0
    %68 = vmatpush2.bf16.msra.mxu0 0
    %69 = vmatprep.subr.bf16.mxu0 0
    %70 = vmatpush2.bf16.msra.mxu0 0
    %71 = vmatprep.subr.bf16.mxu0 0
    %72 = vmatpush2.bf16.msra.mxu0 0
    %73 = vmatprep.subr.bf16.mxu0 0
    %74 = vmatpush2.bf16.msra.mxu0 0
    %75 = vmatprep.subr.bf16.mxu0 0
    %76 = vmatpush2.bf16.msra.mxu0 0
    %77 = vmatprep.subr.bf16.mxu0 0
    %78 = vmatpush2.bf16.msra.mxu0 0
    %79 = vmatprep.subr.bf16.mxu0 0
    %80 = vmatpush2.bf16.msra.mxu0 0
    %81 = vmatprep.mubr.bf16.mxu0 0
    %82 = vmatmul.mubr.bf16.gmra.mxu0 %v40
    %v83 = vpop.f32.mrf.mxu0
    %v84 = vadd.f32 %v26, %v83
    %v85 = vpop.f32.mrf.mxu0
    %v86 = vpop.f32.mrf.mxu0
    %v87 = vadd.f32 %v26, %v86
    %v88 = vpop.f32.mrf.mxu0
    %89 = vmatprep.mubr.bf16.mxu0 0
    %90 = vmatmul.mubr.bf16.gmra.mxu0 %v43
    %v91 = vpop.f32.mrf.mxu0
    %v92 = vadd.f32 %v26, %v91
    %v93 = vpop.f32.mrf.mxu0
    %v94 = vpop.f32.mrf.mxu0
    %v95 = vadd.f32 %v26, %v94
    %v96 = vpop.f32.mrf.mxu0
    %97 = vdwg.mxu0
    %v98 = vpack.c.bf16 %v87, %v84
    %v99 = vpack.c.bf16 %v95, %v92
    %v102 = vunpack.c.l.b16 %v98
    %v103 = vunpack.c.h.b16 %v98
    %v104 = vunpack.c.l.b16 %v99
    %v105 = vunpack.c.h.b16 %v99
    %v106 = vpack.c.b16 %v102, %v102
    %v107 = vpack.c.b16 %v103, %v103
    %v108 = vpack.c.b16 %v104, %v104
    %v109 = vpack.c.b16 %v105, %v105
    %114 = vst [vmem:[#allocation2] sm:$0xf] %v106
    %115 = vst [vmem:[#allocation2 + $0x4] sm:$0xf] %v107
    %116 = vst [vmem:[#allocation2 + $0x8] sm:$0xf] %v108
    %117 = vst [vmem:[#allocation2 + $0xc] sm:$0xf] %v109
    // Predicated region
    $region14: #{tpu_custom_call.1} parent=1 // pred_check
      _
    $region15: #{tpu_custom_call.1} parent=1 // pred_check_branch
      %119 = sbr.rel (0) target = $region17
    $region16: #{tpu_custom_call.1} parent=1 // pred_region
      %s121 = ssub.s32 256, 256
      %122 = vsyncadd [#allocation3], %s121
      %s123 = sshll.u32 [#allocation2], 4
      %s124 = int_to_ptr.vmem [resolvable:$true] %s123
      %129 = dma.vmem_to_hbm [thread:$0]  %s124, 256, %s3, [#allocation3], 64, 64, 4
    $region17: #{tpu_custom_call.1} parent=1 // pred_fallthru
      _
    // Predicated region
    $region18: #{tpu_custom_call.1} parent=1 // pred_check
      _
    $region19: #{tpu_custom_call.1} parent=1 // pred_check_branch
      %131 = sbr.rel (0) target = $region21
    $region20: #{tpu_custom_call.1} parent=1 // pred_region
      %132 = dma.done [#allocation3], 256
    $region21: #{tpu_custom_call.1} parent=1 // pred_fallthru
      _
    %133 = vsyncpa [#allocation3], 1

</llo_original>
